<compile_context>
chip_gen: v7x
topology: tpu7x:2x2x1
jax: 0.10.0
libtpu: 0.0.40
codegen_flags: <defaults>
</compile_context>

<pallas_src>
import functools
import math

import jax
import jax.numpy as jnp
from jax.experimental import pallas as pl
from jax.experimental.pallas import tpu as pltpu


_LANE = 128       # lane width: output/hidden feature dims padded to this
_SUBLANE = 16     # bf16-friendly sublane granularity for the M tile

_ACTS = {
    '': lambda y: y,
    'ReLU': lambda y: jnp.maximum(y, 0.0),
    'Tanh': jnp.tanh,
    'GELU': jax.nn.gelu,
}
_TRANSCENDENTAL_ACTS = ('Tanh', 'GELU')


def _round_up(x, m):
    return (x + m - 1) // m * m


def _fused_mlp_kernel(*refs, num_layers, act):
    """Fused multi-layer weight-norm MLP over one M-tile.

    refs layout:
      refs[0]        : x tile         (TM, K0)      bf16
      refs[1 + 2*i]  : layer-i weight (K_i, pN_i)   bf16, weight-norm scale,
                                                    transpose and lane padding
                                                    folded in at init
      refs[2 + 2*i]  : layer-i bias   (1, pN_i)     f32 (zero in padded lanes)
      refs[-1]       : output tile    (TM, pN_last) f32
    """
    act_fn = _ACTS[act]
    o_ref = refs[-1]
    h = refs[0][...]                                        # bf16
    for i in range(num_layers):
        w = refs[1 + 2 * i][...]                            # bf16
        b = refs[2 + 2 * i][...]                            # f32
        y = jnp.dot(h, w, preferred_element_type=jnp.float32)   # MXU, f32 acc
        hf = act_fn(y + b)                                  # bias + act in f32
        h = hf if i == num_layers - 1 else hf.astype(jnp.bfloat16)
    o_ref[...] = h.astype(o_ref.dtype)


def _vmem_capacity_bytes():
    try:
        return int(pltpu.get_tpu_info().vmem_capacity_bytes)
    except Exception:
        return 64 * 1024 * 1024       # v7x-conservative fallback


def _choose_tiling(M, k0, padded_ns):
    """Pick (tm, vmem_limit_bytes) so tiles + resident weights actually fit."""
    cap = _vmem_capacity_bytes()
    vmem_limit = min(cap * 3 // 4, 96 * 1024 * 1024)   # 48 MiB on v7x, 96 MiB v5e/v6e

    # Resident weights + biases; count x2 so the accounting stays valid even
    # if the Buffered(1) single-buffer request falls back to 2 buffers.
    w_bytes = 0
    k = k0
    for n in padded_ns:
        w_bytes += k * n * 2 + n * 4          # bf16 weight + f32 bias
        k = n
    w_budget = 2 * w_bytes

    # Per-row VMEM: double-buffered bf16 input tile, double-buffered f32
    # output tile, and per-layer intermediate activations (f32 result +
    # bf16 recast copy) that the compiler materializes in VMEM scratch.
    per_row = 2 * k0 * 2 + 2 * padded_ns[-1] * 4 + sum(6 * n for n in padded_ns)
    per_row = int(per_row * 1.25)             # headroom for spills / relayouts

    avail = max(vmem_limit - w_budget - (2 << 20), per_row * _SUBLANE)
    tm = min(avail // per_row, 4096)

    # Guarantee >= 2 grid steps so the "parallel" axis can shard across the
    # two v7x TensorCores (no effect on v5e/v6e).
    half_m = (pl.cdiv(M, 2) // _SUBLANE) * _SUBLANE
    if half_m >= _SUBLANE:
        tm = min(tm, half_m)

    if tm >= M:
        return M, vmem_limit
    tm = max(_SUBLANE, (int(tm) // _SUBLANE) * _SUBLANE)
    return tm, vmem_limit


# Single-buffer the constant weight/bias blocks; fall back to the default
# (double-buffered) specs once if this jax build rejects pipeline_mode here.
_WEIGHT_PIPELINE_MODE = [pl.Buffered(1)]


def fused_mlp(x2d_bf16, layer_params, padded_ns, act, out_dtype):
    """x2d_bf16: (M, K0) bf16.  layer_params: [(w (K,pN) bf16, b (1,pN) f32)]."""
    M, k0 = x2d_bf16.shape
    num_layers = len(layer_params)
    tm, vmem_limit = _choose_tiling(M, k0, padded_ns)
    grid = (pl.cdiv(M, tm),)

    flat_args = [x2d_bf16]
    for w, b in layer_params:
        flat_args += [w, b]

    # Advisory cost estimate so XLA can overlap neighbours with the call.
    flops = 0
    w_bytes = 0
    k = k0
    for n in padded_ns:
        flops += 2 * M * k * n
        w_bytes += k * n * 2 + n * 4
        k = n
    transcendentals = M * sum(padded_ns) if act in _TRANSCENDENTAL_ACTS else 0
    cost = pl.CostEstimate(
        flops=flops,
        transcendentals=transcendentals,
        bytes_accessed=M * k0 * 2 + M * padded_ns[-1] * 4 + w_bytes,
    )

    kernel = functools.partial(_fused_mlp_kernel, num_layers=num_layers, act=act)

    def build(weight_mode):
        in_specs = [pl.BlockSpec((tm, k0), lambda i: (i, 0))]
        for w, b in layer_params:
            if weight_mode is None:
                in_specs.append(pl.BlockSpec(w.shape, lambda i: (0, 0)))
                in_specs.append(pl.BlockSpec(b.shape, lambda i: (0, 0)))
            else:
                in_specs.append(pl.BlockSpec(w.shape, lambda i: (0, 0),
                                             pipeline_mode=weight_mode))
                in_specs.append(pl.BlockSpec(b.shape, lambda i: (0, 0),
                                             pipeline_mode=weight_mode))
        return pl.pallas_call(
            kernel,
            out_shape=jax.ShapeDtypeStruct((M, padded_ns[-1]), out_dtype),
            grid=grid,
            in_specs=in_specs,
            out_specs=pl.BlockSpec((tm, padded_ns[-1]), lambda i: (i, 0)),
            compiler_params=pltpu.CompilerParams(
                dimension_semantics=("parallel",),
                vmem_limit_bytes=vmem_limit,
            ),
            cost_estimate=cost,
        )

    mode = _WEIGHT_PIPELINE_MODE[0]
    try:
        return build(mode)(*flat_args)
    except Exception:
        if mode is None:
            raise
        _WEIGHT_PIPELINE_MODE[0] = None      # remember the fallback
        return build(None)(*flat_args)


class MLP:
    """JAX/Pallas port of Code/models/ban.py::MLP (inference semantics)."""

    def __init__(self, dims, act='ReLU', dropout_r=0.0, key=None):
        # TODO(synk): dropout_r > 0 (training-mode nn.Dropout) not implemented;
        # the default dropout_r=0.0 matches inference semantics exactly.
        assert dropout_r == 0.0
        assert act in _ACTS
        self.dims = list(dims)
        self.act = act
        # Lane-dense padded widths for every layer output / hidden dim.
        self.padded_ns = [_round_up(d, _LANE) for d in dims[1:]]
        if key is None:
            key = jax.random.PRNGKey(0)

        self.raw_params = []   # (v, g, b) exactly as torch weight_norm(dim=None)
        self.params = []       # (w (K, pN) bf16, b (1, pN) f32) pre-folded
        k_in = dims[0]
        for i in range(len(dims) - 1):
            in_dim, out_dim = dims[i], dims[i + 1]
            key, kw, kb = jax.random.split(key, 3)
            # nn.Linear default init: U(-1/sqrt(in_dim), 1/sqrt(in_dim))
            bound = 1.0 / math.sqrt(in_dim)
            v = jax.random.uniform(kw, (out_dim, in_dim), jnp.float32,
                                   -bound, bound)
            b = jax.random.uniform(kb, (out_dim,), jnp.float32, -bound, bound)
            g = jnp.sqrt(jnp.sum(v * v))   # weight_norm(dim=None) init: g=||v||_F
            self.raw_params.append((v, g, b))

            # Fold the (static) weight-norm scale, the transpose, and the
            # lane padding into the stored weight once at init.
            w_eff = (g / jnp.sqrt(jnp.sum(v * v))) * v               # (N, K) f32
            w_kn = jnp.zeros((k_in, self.padded_ns[i]), jnp.float32)
            w_kn = w_kn.at[:in_dim, :out_dim].set(w_eff.T)
            b_pad = jnp.zeros((1, self.padded_ns[i]), jnp.float32)
            b_pad = b_pad.at[0, :out_dim].set(b)
            self.params.append((w_kn.astype(jnp.bfloat16), b_pad))
            k_in = self.padded_ns[i]           # next layer's K is lane-padded

    def __call__(self, x):
        lead = x.shape[:-1]
        # bf16 streaming of x halves HBM traffic; XLA fuses this cast into the
        # producer of x when jitted.
        h = x.reshape(-1, x.shape[-1]).astype(jnp.bfloat16)
        out = fused_mlp(h, self.params, self.padded_ns, self.act, x.dtype)
        out = out[:, :self.dims[-1]]           # drop lane padding
        return out.reshape(*lead, self.dims[-1])


if __name__ == "__main__":
    key = jax.random.PRNGKey(0)
    kx, kx2, kp = jax.random.split(key, 3)

    dims = [32, 64, 16]
    mlp = MLP(dims, act='ReLU', dropout_r=0.0, key=kp)

    def reference_f32(x):
        # plain-jnp reference using the ORIGINAL weight-norm parameterization
        h = x.reshape(-1, dims[0])
        for (v, g, b) in mlp.raw_params:
            w_eff = g * v / jnp.sqrt(jnp.sum(v * v))
            h = jnp.maximum(h @ w_eff.T + b, 0.0)
        return h.reshape(*x.shape[:-1], dims[-1])

    def reference_bf16(x):
        # numerics-matched reference (bf16 operands, f32 accumulation)
        h = x.reshape(-1, dims[0]).astype(jnp.bfloat16)
        hf = None
        for li, (w, b) in enumerate(mlp.params):
            y = jnp.dot(h, w, preferred_element_type=jnp.float32)
            hf = jnp.maximum(y + b, 0.0)
            h = hf.astype(jnp.bfloat16)
        return hf[:, :dims[-1]].reshape(*x.shape[:-1], dims[-1])

    # Small shape typical of BAN: (batch, num_objects, feat_dim).
    x_small = jax.random.normal(kx, (2, 8, dims[0]), dtype=jnp.float32)
    out_small = jax.block_until_ready(mlp(x_small))
    assert out_small.shape == (2, 8, dims[-1])
    assert jnp.allclose(out_small, reference_bf16(x_small), atol=1e-3, rtol=1e-3)
    assert jnp.allclose(out_small, reference_f32(x_small), atol=7e-2, rtol=7e-2)

    # Larger batch to exercise the M-tiled, multi-step (megacore) path.
    x_big = jax.random.normal(kx2, (4, 512, dims[0]), dtype=jnp.float32)
    out_big = jax.block_until_ready(mlp(x_big))
    assert out_big.shape == (4, 512, dims[-1])
    assert jnp.allclose(out_big, reference_bf16(x_big), atol=1e-3, rtol=1e-3)
    assert jnp.allclose(out_big, reference_f32(x_big), atol=7e-2, rtol=7e-2)

    print("KERNEL_OK")
</pallas_src>

<mosaic_0001>
module attributes {stable_mosaic.version = 11 : i64} {
  func.func @_fused_mlp_kernel(%arg0: i32, %arg1: memref<16x32xbf16, #tpu.memory_space<vmem>>, %arg2: memref<32x128xbf16, #tpu.memory_space<vmem>>, %arg3: memref<1x128xf32, #tpu.memory_space<vmem>>, %arg4: memref<128x128xbf16, #tpu.memory_space<vmem>>, %arg5: memref<1x128xf32, #tpu.memory_space<vmem>>, %arg6: memref<16x128xf32, #tpu.memory_space<vmem>>) attributes {dimension_semantics = [#tpu.dimension_semantics<parallel>], iteration_bounds = array<i64: 1>, scalar_prefetch = 0 : i64, scratch_operands = 0 : i64, tpu.core_type = #tpu.core_type<tc>, window_params = [{transform_indices = @transform_0, window_bounds = array<i64: 16, 32>}, {pipeline_mode = #tpu.pipeline_mode<synchronous>, transform_indices = @transform_1, window_bounds = array<i64: 32, 128>}, {pipeline_mode = #tpu.pipeline_mode<synchronous>, transform_indices = @transform_2, window_bounds = array<i64: 1, 128>}, {pipeline_mode = #tpu.pipeline_mode<synchronous>, transform_indices = @transform_3, window_bounds = array<i64: 128, 128>}, {pipeline_mode = #tpu.pipeline_mode<synchronous>, transform_indices = @transform_4, window_bounds = array<i64: 1, 128>}, {transform_indices = @transform_5, window_bounds = array<i64: 16, 128>}]} {
    %c0 = arith.constant 0 : index
    %c0_0 = arith.constant 0 : index
    %0 = vector.load %arg1[%c0, %c0_0] : memref<16x32xbf16, #tpu.memory_space<vmem>>, vector<16x32xbf16>
    %c0_1 = arith.constant 0 : index
    %c0_2 = arith.constant 0 : index
    %1 = vector.load %arg2[%c0_1, %c0_2] : memref<32x128xbf16, #tpu.memory_space<vmem>>, vector<32x128xbf16>
    %c0_3 = arith.constant 0 : index
    %c0_4 = arith.constant 0 : index
    %2 = vector.load %arg3[%c0_3, %c0_4] : memref<1x128xf32, #tpu.memory_space<vmem>>, vector<1x128xf32>
    %cst = arith.constant dense<0.000000e+00> : vector<16x128xf32>
    %3 = tpu.matmul %0, %1, %cst {dimension_numbers = #tpu.dot_dimension_numbers<[1], [0], [0], [1], [0, 0, 1, 1], [], []>} : vector<16x32xbf16>, vector<32x128xbf16>, vector<16x128xf32> -> vector<16x128xf32>
    %4 = vector.broadcast %2 : vector<1x128xf32> to vector<16x128xf32>
    %5 = arith.addf %3, %4 : vector<16x128xf32>
    %cst_5 = arith.constant 0.000000e+00 : f32
    %6 = vector.broadcast %cst_5 : f32 to vector<16x128xf32>
    %7 = arith.maximumf %5, %6 : vector<16x128xf32>
    %8 = arith.truncf %7 : vector<16x128xf32> to vector<16x128xbf16>
    %c0_6 = arith.constant 0 : index
    %c0_7 = arith.constant 0 : index
    %9 = vector.load %arg4[%c0_6, %c0_7] : memref<128x128xbf16, #tpu.memory_space<vmem>>, vector<128x128xbf16>
    %c0_8 = arith.constant 0 : index
    %c0_9 = arith.constant 0 : index
    %10 = vector.load %arg5[%c0_8, %c0_9] : memref<1x128xf32, #tpu.memory_space<vmem>>, vector<1x128xf32>
    %cst_10 = arith.constant dense<0.000000e+00> : vector<16x128xf32>
    %11 = tpu.matmul %8, %9, %cst_10 {dimension_numbers = #tpu.dot_dimension_numbers<[1], [0], [0], [1], [0, 0, 1, 1], [], []>} : vector<16x128xbf16>, vector<128x128xbf16>, vector<16x128xf32> -> vector<16x128xf32>
    %12 = vector.broadcast %10 : vector<1x128xf32> to vector<16x128xf32>
    %13 = arith.addf %11, %12 : vector<16x128xf32>
    %cst_11 = arith.constant 0.000000e+00 : f32
    %14 = vector.broadcast %cst_11 : f32 to vector<16x128xf32>
    %15 = arith.maximumf %13, %14 : vector<16x128xf32>
    %c0_12 = arith.constant 0 : index
    %c0_13 = arith.constant 0 : index
    %16 = vector.load %arg6[%c0_12, %c0_13] : memref<16x128xf32, #tpu.memory_space<vmem>>, vector<16x128xf32>
    tpu.vector_store %arg6[%c0_12, %c0_13], %15 {strides = array<i32>} : memref<16x128xf32, #tpu.memory_space<vmem>>, vector<16x128xf32>,
    return
  }
  func.func @transform_0(%arg0: i32) -> (i32, i32) {
    %c0_i32 = arith.constant 0 : i32
    %c0_i32_0 = arith.constant 0 : i32
    return %arg0, %c0_i32 : i32, i32
  }
  func.func @transform_1(%arg0: i32) -> (i32, i32) {
    %c0_i32 = arith.constant 0 : i32
    %c0_i32_0 = arith.constant 0 : i32
    %c0_i32_1 = arith.constant 0 : i32
    return %c0_i32, %c0_i32_0 : i32, i32
  }
  func.func @transform_2(%arg0: i32) -> (i32, i32) {
    %c0_i32 = arith.constant 0 : i32
    %c0_i32_0 = arith.constant 0 : i32
    %c0_i32_1 = arith.constant 0 : i32
    return %c0_i32, %c0_i32_0 : i32, i32
  }
  func.func @transform_3(%arg0: i32) -> (i32, i32) {
    %c0_i32 = arith.constant 0 : i32
    %c0_i32_0 = arith.constant 0 : i32
    %c0_i32_1 = arith.constant 0 : i32
    return %c0_i32, %c0_i32_0 : i32, i32
  }
  func.func @transform_4(%arg0: i32) -> (i32, i32) {
    %c0_i32 = arith.constant 0 : i32
    %c0_i32_0 = arith.constant 0 : i32
    %c0_i32_1 = arith.constant 0 : i32
    return %c0_i32, %c0_i32_0 : i32, i32
  }
  func.func @transform_5(%arg0: i32) -> (i32, i32) {
    %c0_i32 = arith.constant 0 : i32
    %c0_i32_0 = arith.constant 0 : i32
    return %arg0, %c0_i32 : i32, i32
  }
}

module attributes {stable_mosaic.version = 11 : i64} {
  func.func @_fused_mlp_kernel(%arg0: i32, %arg1: memref<16x32xbf16, #tpu.memory_space<vmem>>, %arg2: memref<32x128xbf16, #tpu.memory_space<vmem>>, %arg3: memref<1x128xf32, #tpu.memory_space<vmem>>, %arg4: memref<128x128xbf16, #tpu.memory_space<vmem>>, %arg5: memref<1x128xf32, #tpu.memory_space<vmem>>, %arg6: memref<16x128xf32, #tpu.memory_space<vmem>>) attributes {dimension_semantics = [#tpu.dimension_semantics<parallel>], iteration_bounds = array<i64: 1>, scalar_prefetch = 0 : i64, scratch_operands = 0 : i64, tpu.core_type = #tpu.core_type<tc>, window_params = [{transform_indices = @transform_0, window_bounds = array<i64: 16, 32>}, {pipeline_mode = #tpu.pipeline_mode<synchronous>, transform_indices = @transform_1, window_bounds = array<i64: 32, 128>}, {pipeline_mode = #tpu.pipeline_mode<synchronous>, transform_indices = @transform_2, window_bounds = array<i64: 1, 128>}, {pipeline_mode = #tpu.pipeline_mode<synchronous>, transform_indices = @transform_3, window_bounds = array<i64: 128, 128>}, {pipeline_mode = #tpu.pipeline_mode<synchronous>, transform_indices = @transform_4, window_bounds = array<i64: 1, 128>}, {transform_indices = @transform_5, window_bounds = array<i64: 16, 128>}]} {
    %c0 = arith.constant 0 : index
    %c0_0 = arith.constant 0 : index
    %0 = vector.load %arg1[%c0, %c0_0] : memref<16x32xbf16, #tpu.memory_space<vmem>>, vector<16x32xbf16>
    %c0_1 = arith.constant 0 : index
    %c0_2 = arith.constant 0 : index
    %1 = vector.load %arg2[%c0_1, %c0_2] : memref<32x128xbf16, #tpu.memory_space<vmem>>, vector<32x128xbf16>
    %c0_3 = arith.constant 0 : index
    %c0_4 = arith.constant 0 : index
    %2 = vector.load %arg3[%c0_3, %c0_4] : memref<1x128xf32, #tpu.memory_space<vmem>>, vector<1x128xf32>
    %cst = arith.constant dense<0.000000e+00> : vector<16x128xf32>
    %3 = tpu.matmul %0, %1, %cst {dimension_numbers = #tpu.dot_dimension_numbers<[1], [0], [0], [1], [0, 0, 1, 1], [], []>} : vector<16x32xbf16>, vector<32x128xbf16>, vector<16x128xf32> -> vector<16x128xf32>
    %4 = vector.broadcast %2 : vector<1x128xf32> to vector<16x128xf32>
    %5 = arith.addf %3, %4 : vector<16x128xf32>
    %cst_5 = arith.constant 0.000000e+00 : f32
    %6 = vector.broadcast %cst_5 : f32 to vector<16x128xf32>
    %7 = arith.maximumf %5, %6 : vector<16x128xf32>
    %8 = arith.truncf %7 : vector<16x128xf32> to vector<16x128xbf16>
    %c0_6 = arith.constant 0 : index
    %c0_7 = arith.constant 0 : index
    %9 = vector.load %arg4[%c0_6, %c0_7] : memref<128x128xbf16, #tpu.memory_space<vmem>>, vector<128x128xbf16>
    %c0_8 = arith.constant 0 : index
    %c0_9 = arith.constant 0 : index
    %10 = vector.load %arg5[%c0_8, %c0_9] : memref<1x128xf32, #tpu.memory_space<vmem>>, vector<1x128xf32>
    %cst_10 = arith.constant dense<0.000000e+00> : vector<16x128xf32>
    %11 = tpu.matmul %8, %9, %cst_10 {dimension_numbers = #tpu.dot_dimension_numbers<[1], [0], [0], [1], [0, 0, 1, 1], [], []>} : vector<16x128xbf16>, vector<128x128xbf16>, vector<16x128xf32> -> vector<16x128xf32>
    %12 = vector.broadcast %10 : vector<1x128xf32> to vector<16x128xf32>
    %13 = arith.addf %11, %12 : vector<16x128xf32>
    %cst_11 = arith.constant 0.000000e+00 : f32
    %14 = vector.broadcast %cst_11 : f32 to vector<16x128xf32>
    %15 = arith.maximumf %13, %14 : vector<16x128xf32>
    %c0_12 = arith.constant 0 : index
    %c0_13 = arith.constant 0 : index
    %16 = vector.load %arg6[%c0_12, %c0_13] : memref<16x128xf32, #tpu.memory_space<vmem>>, vector<16x128xf32>
    tpu.vector_store %arg6[%c0_12, %c0_13], %15 {strides = array<i32>} : memref<16x128xf32, #tpu.memory_space<vmem>>, vector<16x128xf32>,
    return
  }
  func.func @transform_0(%arg0: i32) -> (i32, i32) {
    %c0_i32 = arith.constant 0 : i32
    %c0_i32_0 = arith.constant 0 : i32
    return %arg0, %c0_i32 : i32, i32
  }
  func.func @transform_1(%arg0: i32) -> (i32, i32) {
    %c0_i32 = arith.constant 0 : i32
    %c0_i32_0 = arith.constant 0 : i32
    %c0_i32_1 = arith.constant 0 : i32
    return %c0_i32, %c0_i32_0 : i32, i32
  }
  func.func @transform_2(%arg0: i32) -> (i32, i32) {
    %c0_i32 = arith.constant 0 : i32
    %c0_i32_0 = arith.constant 0 : i32
    %c0_i32_1 = arith.constant 0 : i32
    return %c0_i32, %c0_i32_0 : i32, i32
  }
  func.func @transform_3(%arg0: i32) -> (i32, i32) {
    %c0_i32 = arith.constant 0 : i32
    %c0_i32_0 = arith.constant 0 : i32
    %c0_i32_1 = arith.constant 0 : i32
    return %c0_i32, %c0_i32_0 : i32, i32
  }
  func.func @transform_4(%arg0: i32) -> (i32, i32) {
    %c0_i32 = arith.constant 0 : i32
    %c0_i32_0 = arith.constant 0 : i32
    %c0_i32_1 = arith.constant 0 : i32
    return %c0_i32, %c0_i32_0 : i32, i32
  }
  func.func @transform_5(%arg0: i32) -> (i32, i32) {
    %c0_i32 = arith.constant 0 : i32
    %c0_i32_0 = arith.constant 0 : i32
    return %arg0, %c0_i32 : i32, i32
  }
}

</mosaic_0001>

<llo_original>
// kernel: tpu_custom_call.1
$region0: #{tpu_custom_call.1}
  #allocation0 [shape = 'u32[]', space=smem, size = 0x4, offset = 0x4, fixed_abs, tag = 'smem constant byte address 0x4 - core index']
  #allocation1 [shape = 'u32[144,128]{1,0:T(1,128)}', space=vmem, size = 0x12000, scoped, tag = 'internal scratch']
  %s0 = inlined_call_operand.hbm [shape: bf16[16,32], index: 0, kind: input, shape index: {}]
  %s1 = inlined_call_operand.hbm [shape: bf16[32,128], index: 1, kind: input, shape index: {}]
  %s2 = inlined_call_operand.vmem [shape: f32[1,128], index: 2, kind: input, shape index: {}]
  %s3 = inlined_call_operand.hbm [shape: bf16[128,128], index: 3, kind: input, shape index: {}]
  %s4 = inlined_call_operand.vmem [shape: f32[1,128], index: 4, kind: input, shape index: {}]
  %s5 = inlined_call_operand.hbm [shape: f32[16,128], index: 5, kind: output, shape index: {}]
  %s6 = sld [smem:[#allocation0]]
  $region42: #{tpu_custom_call.1} parent=0
    _
  %s8 = ssub.s32 1, %s6
  %s9 = scalar_select 0, %s8, %s6
  $region1: #{tpu_custom_call.1} parent=0
    #allocation2 [shape = 'u8[4096]{0}', space=vmem, size = 0x1000, scoped, tag = 'input window, operand 0, single buffered']
    #allocation3 [shape = 's32[1]{0}', space=sflag, size = 0x4, scoped, tag = 'scoped memory for tpu_custom_call.1']
    #allocation4 [shape = 's32[1]{0}', space=sflag, size = 0x4, scoped, tag = 'scoped memory for tpu_custom_call.1']
    #allocation5 [shape = 'u8[8192]{0}', space=vmem, size = 0x2000, scoped, tag = 'input window, operand 1, single buffered']
    #allocation6 [shape = 's32[1]{0}', space=sflag, size = 0x4, scoped, tag = 'scoped memory for tpu_custom_call.1']
    #allocation7 [shape = 'u8[32768]{0}', space=vmem, size = 0x8000, scoped, tag = 'input window, operand 3, single buffered']
    #allocation8 [shape = 'u8[8192]{0}', space=vmem, size = 0x2000, scoped, tag = 'output window, operand 0, single buffered']
    %10 = vsyncpa [#allocation3], 0
    %11 = vsyncpa [#allocation6], 0
    %12 = vsyncpa [#allocation4], 0
    // Predicated region
    $region2: #{tpu_custom_call.1} parent=1 // pred_check
      _
    $region3: #{tpu_custom_call.1} parent=1 // pred_check_branch
      %14 = sbr.rel (0) target = $region5
    $region4: #{tpu_custom_call.1} parent=1 // pred_region
      %s16 = ssub.s32 128, 128
      %17 = vsyncadd [#allocation3], %s16
      %s18 = sshll.u32 [#allocation2], 4
      %s19 = int_to_ptr.vmem [resolvable:$true] %s18
      %24 = dma.hbm_to_vmem [thread:$0]  %s0, 128, %s19, [#allocation3], 64, 64, 4
    $region5: #{tpu_custom_call.1} parent=1 // pred_fallthru
      _
    // Predicated region
    $region6: #{tpu_custom_call.1} parent=1 // pred_check
      _
    $region7: #{tpu_custom_call.1} parent=1 // pred_check_branch
      %26 = sbr.rel (0) target = $region9
    $region8: #{tpu_custom_call.1} parent=1 // pred_region
      %s28 = ssub.s32 256, 256
      %29 = vsyncadd [#allocation6], %s28
      %s30 = sshll.u32 [#allocation5], 4
      %s31 = int_to_ptr.vmem [resolvable:$true] %s30
      %36 = dma.hbm_to_vmem [thread:$0]  %s1, 256, %s31, [#allocation6], 64, 64, 4
    $region9: #{tpu_custom_call.1} parent=1 // pred_fallthru
      _
    // Predicated region
    $region10: #{tpu_custom_call.1} parent=1 // pred_check
      _
    $region11: #{tpu_custom_call.1} parent=1 // pred_check_branch
      %38 = sbr.rel (0) target = $region13
    $region12: #{tpu_custom_call.1} parent=1 // pred_region
      _
    $region13: #{tpu_custom_call.1} parent=1 // pred_fallthru
      _
    // Predicated region
    $region14: #{tpu_custom_call.1} parent=1 // pred_check
      _
    $region15: #{tpu_custom_call.1} parent=1 // pred_check_branch
      %40 = sbr.rel (0) target = $region17
    $region16: #{tpu_custom_call.1} parent=1 // pred_region
      %s42 = ssub.s32 1024, 1024
      %43 = vsyncadd [#allocation6], %s42
      %s44 = sshll.u32 [#allocation7], 4
      %s45 = int_to_ptr.vmem [resolvable:$true] %s44
      %50 = dma.hbm_to_vmem [thread:$0]  %s3, 1024, %s45, [#allocation6], 64, 64, 4
    $region17: #{tpu_custom_call.1} parent=1 // pred_fallthru
      _
    // Predicated region
    $region18: #{tpu_custom_call.1} parent=1 // pred_check
      _
    $region19: #{tpu_custom_call.1} parent=1 // pred_check_branch
      %52 = sbr.rel (0) target = $region21
    $region20: #{tpu_custom_call.1} parent=1 // pred_region
      _
    $region21: #{tpu_custom_call.1} parent=1 // pred_fallthru
      _
    // Predicated region
    $region22: #{tpu_custom_call.1} parent=1 // pred_check
      _
    $region23: #{tpu_custom_call.1} parent=1 // pred_check_branch
      %54 = sbr.rel (0) target = $region25
    $region24: #{tpu_custom_call.1} parent=1 // pred_region
      %55 = dma.done [#allocation3], 128
    $region25: #{tpu_custom_call.1} parent=1 // pred_fallthru
      _
    // Predicated region
    $region26: #{tpu_custom_call.1} parent=1 // pred_check
      _
    $region27: #{tpu_custom_call.1} parent=1 // pred_check_branch
      %57 = sbr.rel (0) target = $region29
    $region28: #{tpu_custom_call.1} parent=1 // pred_region
      %58 = dma.done [#allocation6], 256
    $region29: #{tpu_custom_call.1} parent=1 // pred_fallthru
      _
    // Predicated region
    $region30: #{tpu_custom_call.1} parent=1 // pred_check
      _
    $region31: #{tpu_custom_call.1} parent=1 // pred_check_branch
      %60 = sbr.rel (0) target = $region33
    $region32: #{tpu_custom_call.1} parent=1 // pred_region
      %61 = dma.done [#allocation6], 1024
    $region33: #{tpu_custom_call.1} parent=1 // pred_fallthru
      _
    %v63 = vld [vmem:[#allocation2] sm:$0xf]
    %v64 = vld [vmem:[#allocation2 + $0x4] sm:$0xf]
    %v65 = vld [vmem:[#allocation5] sm:$0xf]
    %v66 = vld [vmem:[#allocation5 + $0x4] sm:$0xf]
    %v67 = vld [vmem:[#allocation5 + $0x8] sm:$0xf]
    %v68 = vld [vmem:[#allocation5 + $0xc] sm:$0xf]
    %v69 = vld [vmem:[%s2] sm:$0x1]
    %v71 = vlaneseq
    %v72 = vshrl.u32 %v71, 7
    %v73 = vsub.s32 0, %v72
    %v74 = vrot.slane %v69, %v73
    %v78 = vunpack.c.l.b16 %v63
    %v79 = vunpack.c.l.b16 %v64
    %v80 = vpack.c.b16 %v79, %v78
    %v85 = vunpack.c.l.b16 %v65
    %v86 = vunpack.c.l.b16 %v66
    %v87 = vunpack.c.l.b16 %v67
    %v88 = vunpack.c.l.b16 %v68
    %v89 = vpack.c.b16 %v86, %v85
    %v90 = vpack.c.b16 %v88, %v87
    %vm93 = vcmask 261120
    %v95 = vsel %vm93, %v80, 0
    %97 = vmatprep.subr.bf16.mxu0 0
    %98 = vmatpush1.bf16.msra.mxu0 %v89
    %99 = vmatprep.subr.bf16.mxu0 0
    %100 = vmatpush1.bf16.msra.mxu0 %v90
    %101 = vmatprep.subr.bf16.mxu0 0
    %102 = vmatpush1.bf16.msra.mxu0 0
    %103 = vmatprep.subr.bf16.mxu0 0
    %104 = vmatpush1.bf16.msra.mxu0 0
    %105 = vmatprep.subr.bf16.mxu0 0
    %106 = vmatpush1.bf16.msra.mxu0 0
    %107 = vmatprep.subr.bf16.mxu0 0
    %108 = vmatpush1.bf16.msra.mxu0 0
    %109 = vmatprep.subr.bf16.mxu0 0
    %110 = vmatpush1.bf16.msra.mxu0 0
    %111 = vmatprep.subr.bf16.mxu0 0
    %112 = vmatpush1.bf16.msra.mxu0 0
    %113 = vmatprep.subr.bf16.mxu0 0
    %114 = vmatpush1.bf16.msra.mxu0 0
    %115 = vmatprep.subr.bf16.mxu0 0
    %116 = vmatpush1.bf16.msra.mxu0 0
    %117 = vmatprep.subr.bf16.mxu0 0
    %118 = vmatpush1.bf16.msra.mxu0 0
    %119 = vmatprep.subr.bf16.mxu0 0
    %120 = vmatpush1.bf16.msra.mxu0 0
    %121 = vmatprep.subr.bf16.mxu0 0
    %122 = vmatpush1.bf16.msra.mxu0 0
    %123 = vmatprep.subr.bf16.mxu0 0
    %124 = vmatpush1.bf16.msra.mxu0 0
    %125 = vmatprep.subr.bf16.mxu0 0
    %126 = vmatpush1.bf16.msra.mxu0 0
    %127 = vmatprep.subr.bf16.mxu0 0
    %128 = vmatpush1.bf16.msra.mxu0 0
    %129 = vmatprep.mubr.bf16.mxu0 0
    %130 = vmatmul.mubr.bf16.gmra.mrb[0].mxu0 %v95
    %v131 = vpop.f32.mrb[0].mxu0
    %v132 = vadd.f32 %v74, %v131
    %v133 = vpop.f32.mrb[0].mxu0
    %v134 = vpop.f32.mrb[0].mxu0
    %v135 = vadd.f32 %v74, %v134
    %v136 = vpop.f32.mrb[0].mxu0
    %137 = vdwg.mxu0
    %v138 = vmax.f32 %v132, 0.0
    %v139 = vmax.f32 %v135, 0.0
    %v140 = vpack.c.bf16 %v139, %v138
    %v141 = vld [vmem:[#allocation7] sm:$0xf]
    %v142 = vld [vmem:[#allocation7 + $0x4] sm:$0xf]
    %v143 = vld [vmem:[#allocation7 + $0x8] sm:$0xf]
    %v144 = vld [vmem:[#allocation7 + $0xc] sm:$0xf]
    %v145 = vld [vmem:[#allocation7 + $0x10] sm:$0xf]
    %v146 = vld [vmem:[#allocation7 + $0x14] sm:$0xf]
    %v147 = vld [vmem:[#allocation7 + $0x18] sm:$0xf]
    %v148 = vld [vmem:[#allocation7 + $0x1c] sm:$0xf]
    %v149 = vld [vmem:[#allocation7 + $0x20] sm:$0xf]
    %v150 = vld [vmem:[#allocation7 + $0x24] sm:$0xf]
    %v151 = vld [vmem:[#allocation7 + $0x28] sm:$0xf]
    %v152 = vld [vmem:[#allocation7 + $0x2c] sm:$0xf]
    %v153 = vld [vmem:[#allocation7 + $0x30] sm:$0xf]
    %v154 = vld [vmem:[#allocation7 + $0x34] sm:$0xf]
    %v155 = vld [vmem:[#allocation7 + $0x38] sm:$0xf]
    %v156 = vld [vmem:[#allocation7 + $0x3c] sm:$0xf]
    %v157 = vld [vmem:[%s4] sm:$0x1]
    %v159 = vlaneseq
    %v160 = vshrl.u32 %v159, 7
    %v161 = vsub.s32 0, %v160
    %v162 = vrot.slane %v157, %v161
    %v180 = vunpack.c.l.b16 %v141
    %v181 = vunpack.c.l.b16 %v142
    %v182 = vunpack.c.l.b16 %v143
    %v183 = vunpack.c.l.b16 %v144
    %v184 = vunpack.c.l.b16 %v145
    %v185 = vunpack.c.l.b16 %v146
    %v186 = vunpack.c.l.b16 %v147
    %v187 = vunpack.c.l.b16 %v148
    %v188 = vunpack.c.l.b16 %v149
    %v189 = vunpack.c.l.b16 %v150
    %v190 = vunpack.c.l.b16 %v151
    %v191 = vunpack.c.l.b16 %v152
    %v192 = vunpack.c.l.b16 %v153
    %v193 = vunpack.c.l.b16 %v154
    %v194 = vunpack.c.l.b16 %v155
    %v195 = vunpack.c.l.b16 %v156
    %v196 = vpack.c.b16 %v181, %v180
    %v197 = vpack.c.b16 %v183, %v182
    %v198 = vpack.c.b16 %v185, %v184
    %v199 = vpack.c.b16 %v187, %v186
    %v200 = vpack.c.b16 %v189, %v188
    %v201 = vpack.c.b16 %v191, %v190
    %v202 = vpack.c.b16 %v193, %v192
    %v203 = vpack.c.b16 %v195, %v194
    %212 = vmatprep.subr.bf16.mxu0 0
    %213 = vmatpush1.bf16.msra.mxu0 %v196
    %214 = vmatprep.subr.bf16.mxu0 0
    %215 = vmatpush1.bf16.msra.mxu0 %v197
    %216 = vmatprep.subr.bf16.mxu0 0
    %217 = vmatpush1.bf16.msra.mxu0 %v198
    %218 = vmatprep.subr.bf16.mxu0 0
    %219 = vmatpush1.bf16.msra.mxu0 %v199
    %220 = vmatprep.subr.bf16.mxu0 0
    %221 = vmatpush1.bf16.msra.mxu0 %v200
    %222 = vmatprep.subr.bf16.mxu0 0
    %223 = vmatpush1.bf16.msra.mxu0 %v201
    %224 = vmatprep.subr.bf16.mxu0 0
    %225 = vmatpush1.bf16.msra.mxu0 %v202
    %226 = vmatprep.subr.bf16.mxu0 0
    %227 = vmatpush1.bf16.msra.mxu0 %v203
    %228 = vmatprep.subr.bf16.mxu0 0
    %229 = vmatpush1.bf16.msra.mxu0 0
    %230 = vmatprep.subr.bf16.mxu0 0
    %231 = vmatpush1.bf16.msra.mxu0 0
    %232 = vmatprep.subr.bf16.mxu0 0
    %233 = vmatpush1.bf16.msra.mxu0 0
    %234 = vmatprep.subr.bf16.mxu0 0
    %235 = vmatpush1.bf16.msra.mxu0 0
    %236 = vmatprep.subr.bf16.mxu0 0
    %237 = vmatpush1.bf16.msra.mxu0 0
    %238 = vmatprep.subr.bf16.mxu0 0
    %239 = vmatpush1.bf16.msra.mxu0 0
    %240 = vmatprep.subr.bf16.mxu0 0
    %241 = vmatpush1.bf16.msra.mxu0 0
    %242 = vmatprep.subr.bf16.mxu0 0
    %243 = vmatpush1.bf16.msra.mxu0 0
    %244 = vmatprep.mubr.bf16.mxu0 0
    %245 = vmatmul.mubr.bf16.gmra.mrb[0].mxu0 %v140
    %v246 = vpop.f32.mrb[0].mxu0
    %v247 = vadd.f32 %v162, %v246
    %v248 = vpop.f32.mrb[0].mxu0
    %v249 = vpop.f32.mrb[0].mxu0
    %v250 = vadd.f32 %v162, %v249
    %v251 = vpop.f32.mrb[0].mxu0
    %252 = vdwg.mxu0
    %v253 = vmax.f32 %v247, 0.0
    %v254 = vmax.f32 %v250, 0.0
    %255 = vst [vmem:[#allocation8] sm:$0xff] %v253
    %256 = vst [vmem:[#allocation8 + $0x8] sm:$0xff] %v254
    // Predicated region
    $region34: #{tpu_custom_call.1} parent=1 // pred_check
      _
    $region35: #{tpu_custom_call.1} parent=1 // pred_check_branch
      %258 = sbr.rel (0) target = $region37
    $region36: #{tpu_custom_call.1} parent=1 // pred_region
      %s260 = ssub.s32 256, 256
      %261 = vsyncadd [#allocation4], %s260
      %s262 = sshll.u32 [#allocation8], 4
      %s263 = int_to_ptr.vmem [resolvable:$true] %s262
      %268 = dma.vmem_to_hbm [thread:$0]  %s263, 256, %s5, [#allocation4], 128, 128, 8
    $region37: #{tpu_custom_call.1} parent=1 // pred_fallthru
      _
    // Predicated region
    $region38: #{tpu_custom_call.1} parent=1 // pred_check
      _
    $region39: #{tpu_custom_call.1} parent=1 // pred_check_branch
      %270 = sbr.rel (0) target = $region41
    $region40: #{tpu_custom_call.1} parent=1 // pred_region
      %271 = dma.done [#allocation4], 256
    $region41: #{tpu_custom_call.1} parent=1 // pred_fallthru
      _
    %272 = vsyncpa [#allocation3], 1
    %273 = vsyncpa [#allocation6], 1
    %274 = vsyncpa [#allocation4], 1

// kernel: tpu_custom_call.1
$region0: #{tpu_custom_call.1}
  #allocation0 [shape = 'u32[]', space=smem, size = 0x4, offset = 0x4, fixed_abs, tag = 'smem constant byte address 0x4 - core index']
  #allocation1 [shape = 'u32[144,128]{1,0:T(1,128)}', space=vmem, size = 0x12000, scoped, tag = 'internal scratch']
  %s0 = inlined_call_operand.hbm [shape: bf16[16,32], index: 0, kind: input, shape index: {}]
  %s1 = inlined_call_operand.hbm [shape: bf16[32,128], index: 1, kind: input, shape index: {}]
  %s2 = inlined_call_operand.vmem [shape: f32[1,128], index: 2, kind: input, shape index: {}]
  %s3 = inlined_call_operand.hbm [shape: bf16[128,128], index: 3, kind: input, shape index: {}]
  %s4 = inlined_call_operand.vmem [shape: f32[1,128], index: 4, kind: input, shape index: {}]
  %s5 = inlined_call_operand.hbm [shape: f32[16,128], index: 5, kind: output, shape index: {}]
  %s6 = sld [smem:[#allocation0]]
  $region42: #{tpu_custom_call.1} parent=0
    _
  %s8 = ssub.s32 1, %s6
  %s9 = scalar_select 0, %s8, %s6
  $region1: #{tpu_custom_call.1} parent=0
    #allocation2 [shape = 'u8[4096]{0}', space=vmem, size = 0x1000, scoped, tag = 'input window, operand 0, single buffered']
    #allocation3 [shape = 's32[1]{0}', space=sflag, size = 0x4, scoped, tag = 'scoped memory for tpu_custom_call.1']
    #allocation4 [shape = 's32[1]{0}', space=sflag, size = 0x4, scoped, tag = 'scoped memory for tpu_custom_call.1']
    #allocation5 [shape = 'u8[8192]{0}', space=vmem, size = 0x2000, scoped, tag = 'input window, operand 1, single buffered']
    #allocation6 [shape = 's32[1]{0}', space=sflag, size = 0x4, scoped, tag = 'scoped memory for tpu_custom_call.1']
    #allocation7 [shape = 'u8[32768]{0}', space=vmem, size = 0x8000, scoped, tag = 'input window, operand 3, single buffered']
    #allocation8 [shape = 'u8[8192]{0}', space=vmem, size = 0x2000, scoped, tag = 'output window, operand 0, single buffered']
    %10 = vsyncpa [#allocation3], 0
    %11 = vsyncpa [#allocation6], 0
    %12 = vsyncpa [#allocation4], 0
    // Predicated region
    $region2: #{tpu_custom_call.1} parent=1 // pred_check
      _
    $region3: #{tpu_custom_call.1} parent=1 // pred_check_branch
      %14 = sbr.rel (0) target = $region5
    $region4: #{tpu_custom_call.1} parent=1 // pred_region
      %s16 = ssub.s32 128, 128
      %17 = vsyncadd [#allocation3], %s16
      %s18 = sshll.u32 [#allocation2], 4
      %s19 = int_to_ptr.vmem [resolvable:$true] %s18
      %24 = dma.hbm_to_vmem [thread:$0]  %s0, 128, %s19, [#allocation3], 64, 64, 4
    $region5: #{tpu_custom_call.1} parent=1 // pred_fallthru
      _
    // Predicated region
    $region6: #{tpu_custom_call.1} parent=1 // pred_check
      _
    $region7: #{tpu_custom_call.1} parent=1 // pred_check_branch
      %26 = sbr.rel (0) target = $region9
    $region8: #{tpu_custom_call.1} parent=1 // pred_region
      %s28 = ssub.s32 256, 256
      %29 = vsyncadd [#allocation6], %s28
      %s30 = sshll.u32 [#allocation5], 4
      %s31 = int_to_ptr.vmem [resolvable:$true] %s30
      %36 = dma.hbm_to_vmem [thread:$0]  %s1, 256, %s31, [#allocation6], 64, 64, 4
    $region9: #{tpu_custom_call.1} parent=1 // pred_fallthru
      _
    // Predicated region
    $region10: #{tpu_custom_call.1} parent=1 // pred_check
      _
    $region11: #{tpu_custom_call.1} parent=1 // pred_check_branch
      %38 = sbr.rel (0) target = $region13
    $region12: #{tpu_custom_call.1} parent=1 // pred_region
      _
    $region13: #{tpu_custom_call.1} parent=1 // pred_fallthru
      _
    // Predicated region
    $region14: #{tpu_custom_call.1} parent=1 // pred_check
      _
    $region15: #{tpu_custom_call.1} parent=1 // pred_check_branch
      %40 = sbr.rel (0) target = $region17
    $region16: #{tpu_custom_call.1} parent=1 // pred_region
      %s42 = ssub.s32 1024, 1024
      %43 = vsyncadd [#allocation6], %s42
      %s44 = sshll.u32 [#allocation7], 4
      %s45 = int_to_ptr.vmem [resolvable:$true] %s44
      %50 = dma.hbm_to_vmem [thread:$0]  %s3, 1024, %s45, [#allocation6], 64, 64, 4
    $region17: #{tpu_custom_call.1} parent=1 // pred_fallthru
      _
    // Predicated region
    $region18: #{tpu_custom_call.1} parent=1 // pred_check
      _
    $region19: #{tpu_custom_call.1} parent=1 // pred_check_branch
      %52 = sbr.rel (0) target = $region21
    $region20: #{tpu_custom_call.1} parent=1 // pred_region
      _
    $region21: #{tpu_custom_call.1} parent=1 // pred_fallthru
      _
    // Predicated region
    $region22: #{tpu_custom_call.1} parent=1 // pred_check
      _
    $region23: #{tpu_custom_call.1} parent=1 // pred_check_branch
      %54 = sbr.rel (0) target = $region25
    $region24: #{tpu_custom_call.1} parent=1 // pred_region
      %55 = dma.done [#allocation3], 128
    $region25: #{tpu_custom_call.1} parent=1 // pred_fallthru
      _
    // Predicated region
    $region26: #{tpu_custom_call.1} parent=1 // pred_check
      _
    $region27: #{tpu_custom_call.1} parent=1 // pred_check_branch
      %57 = sbr.rel (0) target = $region29
    $region28: #{tpu_custom_call.1} parent=1 // pred_region
      %58 = dma.done [#allocation6], 256
    $region29: #{tpu_custom_call.1} parent=1 // pred_fallthru
      _
    // Predicated region
    $region30: #{tpu_custom_call.1} parent=1 // pred_check
      _
    $region31: #{tpu_custom_call.1} parent=1 // pred_check_branch
      %60 = sbr.rel (0) target = $region33
    $region32: #{tpu_custom_call.1} parent=1 // pred_region
      %61 = dma.done [#allocation6], 1024
    $region33: #{tpu_custom_call.1} parent=1 // pred_fallthru
      _
    %v63 = vld [vmem:[#allocation2] sm:$0xf]
    %v64 = vld [vmem:[#allocation2 + $0x4] sm:$0xf]
    %v65 = vld [vmem:[#allocation5] sm:$0xf]
    %v66 = vld [vmem:[#allocation5 + $0x4] sm:$0xf]
    %v67 = vld [vmem:[#allocation5 + $0x8] sm:$0xf]
    %v68 = vld [vmem:[#allocation5 + $0xc] sm:$0xf]
    %v69 = vld [vmem:[%s2] sm:$0x1]
    %v71 = vlaneseq
    %v72 = vshrl.u32 %v71, 7
    %v73 = vsub.s32 0, %v72
    %v74 = vrot.slane %v69, %v73
    %v78 = vunpack.c.l.b16 %v63
    %v79 = vunpack.c.l.b16 %v64
    %v80 = vpack.c.b16 %v79, %v78
    %v85 = vunpack.c.l.b16 %v65
    %v86 = vunpack.c.l.b16 %v66
    %v87 = vunpack.c.l.b16 %v67
    %v88 = vunpack.c.l.b16 %v68
    %v89 = vpack.c.b16 %v86, %v85
    %v90 = vpack.c.b16 %v88, %v87
    %vm93 = vcmask 261120
    %v95 = vsel %vm93, %v80, 0
    %97 = vmatprep.subr.bf16.mxu0 0
    %98 = vmatpush1.bf16.msra.mxu0 %v89
    %99 = vmatprep.subr.bf16.mxu0 0
    %100 = vmatpush1.bf16.msra.mxu0 %v90
    %101 = vmatprep.subr.bf16.mxu0 0
    %102 = vmatpush1.bf16.msra.mxu0 0
    %103 = vmatprep.subr.bf16.mxu0 0
    %104 = vmatpush1.bf16.msra.mxu0 0
    %105 = vmatprep.subr.bf16.mxu0 0
    %106 = vmatpush1.bf16.msra.mxu0 0
    %107 = vmatprep.subr.bf16.mxu0 0
    %108 = vmatpush1.bf16.msra.mxu0 0
    %109 = vmatprep.subr.bf16.mxu0 0
    %110 = vmatpush1.bf16.msra.mxu0 0
    %111 = vmatprep.subr.bf16.mxu0 0
    %112 = vmatpush1.bf16.msra.mxu0 0
    %113 = vmatprep.subr.bf16.mxu0 0
    %114 = vmatpush1.bf16.msra.mxu0 0
    %115 = vmatprep.subr.bf16.mxu0 0
    %116 = vmatpush1.bf16.msra.mxu0 0
    %117 = vmatprep.subr.bf16.mxu0 0
    %118 = vmatpush1.bf16.msra.mxu0 0
    %119 = vmatprep.subr.bf16.mxu0 0
    %120 = vmatpush1.bf16.msra.mxu0 0
    %121 = vmatprep.subr.bf16.mxu0 0
    %122 = vmatpush1.bf16.msra.mxu0 0
    %123 = vmatprep.subr.bf16.mxu0 0
    %124 = vmatpush1.bf16.msra.mxu0 0
    %125 = vmatprep.subr.bf16.mxu0 0
    %126 = vmatpush1.bf16.msra.mxu0 0
    %127 = vmatprep.subr.bf16.mxu0 0
    %128 = vmatpush1.bf16.msra.mxu0 0
    %129 = vmatprep.mubr.bf16.mxu0 0
    %130 = vmatmul.mubr.bf16.gmra.mrb[0].mxu0 %v95
    %v131 = vpop.f32.mrb[0].mxu0
    %v132 = vadd.f32 %v74, %v131
    %v133 = vpop.f32.mrb[0].mxu0
    %v134 = vpop.f32.mrb[0].mxu0
    %v135 = vadd.f32 %v74, %v134
    %v136 = vpop.f32.mrb[0].mxu0
    %137 = vdwg.mxu0
    %v138 = vmax.f32 %v132, 0.0
    %v139 = vmax.f32 %v135, 0.0
    %v140 = vpack.c.bf16 %v139, %v138
    %v141 = vld [vmem:[#allocation7] sm:$0xf]
    %v142 = vld [vmem:[#allocation7 + $0x4] sm:$0xf]
    %v143 = vld [vmem:[#allocation7 + $0x8] sm:$0xf]
    %v144 = vld [vmem:[#allocation7 + $0xc] sm:$0xf]
    %v145 = vld [vmem:[#allocation7 + $0x10] sm:$0xf]
    %v146 = vld [vmem:[#allocation7 + $0x14] sm:$0xf]
    %v147 = vld [vmem:[#allocation7 + $0x18] sm:$0xf]
    %v148 = vld [vmem:[#allocation7 + $0x1c] sm:$0xf]
    %v149 = vld [vmem:[#allocation7 + $0x20] sm:$0xf]
    %v150 = vld [vmem:[#allocation7 + $0x24] sm:$0xf]
    %v151 = vld [vmem:[#allocation7 + $0x28] sm:$0xf]
    %v152 = vld [vmem:[#allocation7 + $0x2c] sm:$0xf]
    %v153 = vld [vmem:[#allocation7 + $0x30] sm:$0xf]
    %v154 = vld [vmem:[#allocation7 + $0x34] sm:$0xf]
    %v155 = vld [vmem:[#allocation7 + $0x38] sm:$0xf]
    %v156 = vld [vmem:[#allocation7 + $0x3c] sm:$0xf]
    %v157 = vld [vmem:[%s4] sm:$0x1]
    %v159 = vlaneseq
    %v160 = vshrl.u32 %v159, 7
    %v161 = vsub.s32 0, %v160
    %v162 = vrot.slane %v157, %v161
    %v180 = vunpack.c.l.b16 %v141
    %v181 = vunpack.c.l.b16 %v142
    %v182 = vunpack.c.l.b16 %v143
    %v183 = vunpack.c.l.b16 %v144
    %v184 = vunpack.c.l.b16 %v145
    %v185 = vunpack.c.l.b16 %v146
    %v186 = vunpack.c.l.b16 %v147
    %v187 = vunpack.c.l.b16 %v148
    %v188 = vunpack.c.l.b16 %v149
    %v189 = vunpack.c.l.b16 %v150
    %v190 = vunpack.c.l.b16 %v151
    %v191 = vunpack.c.l.b16 %v152
    %v192 = vunpack.c.l.b16 %v153
    %v193 = vunpack.c.l.b16 %v154
    %v194 = vunpack.c.l.b16 %v155
    %v195 = vunpack.c.l.b16 %v156
    %v196 = vpack.c.b16 %v181, %v180
    %v197 = vpack.c.b16 %v183, %v182
    %v198 = vpack.c.b16 %v185, %v184
    %v199 = vpack.c.b16 %v187, %v186
    %v200 = vpack.c.b16 %v189, %v188
    %v201 = vpack.c.b16 %v191, %v190
    %v202 = vpack.c.b16 %v193, %v192
    %v203 = vpack.c.b16 %v195, %v194
    %212 = vmatprep.subr.bf16.mxu0 0
    %213 = vmatpush1.bf16.msra.mxu0 %v196
    %214 = vmatprep.subr.bf16.mxu0 0
    %215 = vmatpush1.bf16.msra.mxu0 %v197
    %216 = vmatprep.subr.bf16.mxu0 0
    %217 = vmatpush1.bf16.msra.mxu0 %v198
    %218 = vmatprep.subr.bf16.mxu0 0
    %219 = vmatpush1.bf16.msra.mxu0 %v199
    %220 = vmatprep.subr.bf16.mxu0 0
    %221 = vmatpush1.bf16.msra.mxu0 %v200
    %222 = vmatprep.subr.bf16.mxu0 0
    %223 = vmatpush1.bf16.msra.mxu0 %v201
    %224 = vmatprep.subr.bf16.mxu0 0
    %225 = vmatpush1.bf16.msra.mxu0 %v202
    %226 = vmatprep.subr.bf16.mxu0 0
    %227 = vmatpush1.bf16.msra.mxu0 %v203
    %228 = vmatprep.subr.bf16.mxu0 0
    %229 = vmatpush1.bf16.msra.mxu0 0
    %230 = vmatprep.subr.bf16.mxu0 0
    %231 = vmatpush1.bf16.msra.mxu0 0
    %232 = vmatprep.subr.bf16.mxu0 0
    %233 = vmatpush1.bf16.msra.mxu0 0
    %234 = vmatprep.subr.bf16.mxu0 0
    %235 = vmatpush1.bf16.msra.mxu0 0
    %236 = vmatprep.subr.bf16.mxu0 0
    %237 = vmatpush1.bf16.msra.mxu0 0
    %238 = vmatprep.subr.bf16.mxu0 0
    %239 = vmatpush1.bf16.msra.mxu0 0
    %240 = vmatprep.subr.bf16.mxu0 0
    %241 = vmatpush1.bf16.msra.mxu0 0
    %242 = vmatprep.subr.bf16.mxu0 0
    %243 = vmatpush1.bf16.msra.mxu0 0
    %244 = vmatprep.mubr.bf16.mxu0 0
    %245 = vmatmul.mubr.bf16.gmra.mrb[0].mxu0 %v140
    %v246 = vpop.f32.mrb[0].mxu0
    %v247 = vadd.f32 %v162, %v246
    %v248 = vpop.f32.mrb[0].mxu0
    %v249 = vpop.f32.mrb[0].mxu0
    %v250 = vadd.f32 %v162, %v249
    %v251 = vpop.f32.mrb[0].mxu0
    %252 = vdwg.mxu0
    %v253 = vmax.f32 %v247, 0.0
    %v254 = vmax.f32 %v250, 0.0
    %255 = vst [vmem:[#allocation8] sm:$0xff] %v253
    %256 = vst [vmem:[#allocation8 + $0x8] sm:$0xff] %v254
    // Predicated region
    $region34: #{tpu_custom_call.1} parent=1 // pred_check
      _
    $region35: #{tpu_custom_call.1} parent=1 // pred_check_branch
      %258 = sbr.rel (0) target = $region37
    $region36: #{tpu_custom_call.1} parent=1 // pred_region
      %s260 = ssub.s32 256, 256
      %261 = vsyncadd [#allocation4], %s260
      %s262 = sshll.u32 [#allocation8], 4
      %s263 = int_to_ptr.vmem [resolvable:$true] %s262
      %268 = dma.vmem_to_hbm [thread:$0]  %s263, 256, %s5, [#allocation4], 128, 128, 8
    $region37: #{tpu_custom_call.1} parent=1 // pred_fallthru
      _
    // Predicated region
    $region38: #{tpu_custom_call.1} parent=1 // pred_check
      _
    $region39: #{tpu_custom_call.1} parent=1 // pred_check_branch
      %270 = sbr.rel (0) target = $region41
    $region40: #{tpu_custom_call.1} parent=1 // pred_region
      %271 = dma.done [#allocation4], 256
    $region41: #{tpu_custom_call.1} parent=1 // pred_fallthru
      _
    %272 = vsyncpa [#allocation3], 1
    %273 = vsyncpa [#allocation6], 1
    %274 = vsyncpa [#allocation4], 1

</llo_original>
